<compile_context>
chip_gen: v7x
topology: tpu7x:2x2x1
jax: 0.10.0
libtpu: 0.0.40
codegen_flags: <defaults>
</compile_context>

<pallas_src>
import functools

import jax
import jax.numpy as jnp
from jax import lax
from jax.experimental import pallas as pl
from jax.experimental.pallas import tpu as pltpu

EPS = 1e-5


# --------------------------------- kernel ---------------------------------
def _conv_block_kernel(x_ref, wb1_ref, g1_ref, b1_ref, wb2_ref, g2_ref, b2_ref,
                       out_ref, *, height, width, cout):
    """Fused (conv3x3 -> BN(batch stats) -> ReLU) x 2, all resident in VMEM.

    x_ref    : (N*H, W*Cin)  f32   rows ordered (n, h); lanes ordered (w, c), c minor
    wb*_ref  : (3, W*Cin_s, W*Cout) bf16 banded conv weights (dx taps + width padding)
    g*/b*    : (1, W*Cout)   f32   BN gamma/beta pre-tiled to the lane layout
    out_ref  : (N*H, W*Cout) f32   lane-dense output (W*Cout multiple of 128)
    """
    rows = x_ref.shape[0]            # N*H
    wcout = out_ref.shape[-1]        # W*Cout
    inv_m = 1.0 / (rows * width)     # 1 / (N*H*W): BN reduction size per channel

    def channel_allreduce(v):
        # v: (1, W*Cout) per-lane sums, lanes ordered (w, c) with c minor.
        # log2(W) circular lane rolls (XLU slot) sum the W lane-groups of each
        # channel and leave the per-channel totals broadcast across all of that
        # channel's lanes (requires W to be a power of two; asserted in wrapper).
        step = cout
        while step < wcout:
            v = v + pltpu.roll(v, shift=step, axis=1)
            step *= 2
        return v

    def conv_bn_relu(x2d, wb_ref, gamma, beta):
        r, wc_in = x2d.shape
        # In-image row index of every output row, for the dy boundary masks.
        h_idx = lax.broadcasted_iota(jnp.int32, (r, wc_in), 0) % height
        masks = {0: h_idx != 0,              # dy=-1 tap: source row above image top
                 2: h_idx != (height - 1)}   # dy=+1 tap: source row below image bottom

        # 3x3 conv (no bias: it cancels under training-mode BN) as 3 MXU matmuls,
        # one per kernel row dy; the dx taps + width padding live in the banded
        # weight; the dy shift is a sublane roll + boundary mask (XLU/VPU, free
        # relative to the MXU).
        acc = jnp.zeros((r, wcout), jnp.float32)
        for dy in range(3):
            if dy == 1:
                tap = x2d
            else:
                tap = pltpu.roll(x2d, shift=(1 - dy) % r, axis=0)   # tap[r] = x[r+dy-1]
                tap = jnp.where(masks[dy], tap, 0.0)                # zero out-of-image rows
            acc = acc + jnp.dot(tap.astype(jnp.bfloat16), wb_ref[dy],
                                preferred_element_type=jnp.float32)

        # BatchNorm, training semantics, single pass (sum & sum of squares), all f32.
        csum = channel_allreduce(jnp.sum(acc, axis=0, keepdims=True))
        csq = channel_allreduce(jnp.sum(acc * acc, axis=0, keepdims=True))
        mean = csum * inv_m
        var = jnp.maximum(csq * inv_m - mean * mean, 0.0)   # clamp: E[x^2]-E[x]^2 can go <0
        scale = gamma * lax.rsqrt(var + EPS)                # (1, W*Cout), lane-dense
        offset = beta - scale * mean
        return jnp.maximum(acc * scale + offset, 0.0)

    h1 = conv_bn_relu(x_ref[...], wb1_ref, g1_ref[...], b1_ref[...])
    out_ref[...] = conv_bn_relu(h1, wb2_ref, g2_ref[...], b2_ref[...])


# ----------------------- constant building (one-time) -----------------------
def _banded_conv_weights(w_hwio, width):
    """(3, 3, Cin, Cout) HWIO kernel -> (3, W*Cin, W*Cout) banded bf16 matrices.

    band[dy][wi*Cin + c, wo*Cout + d] = w[dy, wi-wo+1, c, d] if |wi - wo| <= 1,
    else 0 — all three dx taps and the width zero-padding of a stride-1 pad=1
    conv in one matmul per kernel row dy.  Free while W*C <= the MXU K tile
    (128 on v5e, 256 on v6e/v7x), which holds at these shapes.
    # TODO(synk): once W*C exceeds the MXU K tile, switch to dense per-dx
    # (Cin, Cout) taps applied with lane rolls by Cin so MXU FLOPs / weight
    # bytes stay O(9*Cin*Cout) instead of O(W*Cin*Cout).
    """
    _, _, cin, cout = w_hwio.shape
    bands = []
    for dy in range(3):
        b = jnp.zeros((width, cin, width, cout), jnp.float32)
        for dx in range(3):
            off = dx - 1                                    # wi = wo + off
            diag = jnp.eye(width, width, k=-off, dtype=jnp.float32)
            b = b + jnp.einsum("iw,cd->icwd", diag, w_hwio[dy, dx])
        bands.append(b.reshape(width * cin, width * cout))
    return jnp.stack(bands, axis=0).astype(jnp.bfloat16)


def prepare_conv_block_constants(params, width):
    """Build the kernel's constants ONCE, outside the per-call path."""
    cout = params["gamma1"].shape[0]
    tile = lambda v: jnp.tile(v, width).reshape(1, width * cout).astype(jnp.float32)
    return {
        "wb1": _banded_conv_weights(params["w1"], width),   # (3, W*Cin,  W*Cout) bf16
        "wb2": _banded_conv_weights(params["w2"], width),   # (3, W*Cout, W*Cout) bf16
        "gamma1": tile(params["gamma1"]), "beta1": tile(params["beta1"]),
        "gamma2": tile(params["gamma2"]), "beta2": tile(params["beta2"]),
        # Conv biases params["b1"]/["b2"] intentionally omitted: a per-channel
        # constant added before training-mode BN cancels exactly.
    }


# --------------------------------- wrapper ---------------------------------
@jax.jit
def conv_block_forward(x_nchw, consts):
    """ConvBlock.forward — NCHW in / NCHW out, mirroring the PyTorch module."""
    n, cin, h, w = x_nchw.shape
    cout = consts["gamma1"].shape[-1] // w
    assert w > 0 and (w & (w - 1)) == 0, "kernel assumes W is a power of two"

    # Layout plumbing only (fused by XLA): NCHW -> lane-dense (N*H, W*Cin).
    x2d = jnp.transpose(x_nchw, (0, 2, 3, 1)).reshape(n * h, w * cin)

    vmem = pl.BlockSpec(memory_space=pltpu.MemorySpace.VMEM)
    out2d = pl.pallas_call(
        functools.partial(_conv_block_kernel, height=h, width=w, cout=cout),
        out_shape=jax.ShapeDtypeStruct((n * h, w * cout), jnp.float32),
        in_specs=[vmem] * 7,
        out_specs=vmem,
        # TODO(synk): for large N*H (and v7x's 2 TCs / 64 MiB VMEM), add a
        # ("parallel",) grid over row blocks with two-phase BN statistics
        # (per-block partial sums -> combine -> normalize) and set
        # vmem_limit_bytes explicitly, budgeting 2x per double-buffered input.
    )(x2d, consts["wb1"], consts["gamma1"], consts["beta1"],
      consts["wb2"], consts["gamma2"], consts["beta2"])

    out = out2d.reshape(n, h, w, cout)                       # (n, h, w, c)
    return jnp.transpose(out, (0, 3, 1, 2))                  # -> NCHW


# ---------------------------- parameters & reference ---------------------------
def init_conv_block_params(key, in_c, out_c):
    """Deterministic synthetic parameters (shapes match nn.Conv2d / nn.BatchNorm2d)."""
    ks = jax.random.split(key, 8)
    return {
        "w1": jax.random.normal(ks[0], (3, 3, in_c, out_c), jnp.float32) * 0.1,
        "b1": jax.random.normal(ks[1], (out_c,), jnp.float32) * 0.1,
        "gamma1": 1.0 + 0.1 * jax.random.normal(ks[2], (out_c,), jnp.float32),
        "beta1": 0.1 * jax.random.normal(ks[3], (out_c,), jnp.float32),
        "w2": jax.random.normal(ks[4], (3, 3, out_c, out_c), jnp.float32) * 0.1,
        "b2": jax.random.normal(ks[5], (out_c,), jnp.float32) * 0.1,
        "gamma2": 1.0 + 0.1 * jax.random.normal(ks[6], (out_c,), jnp.float32),
        "beta2": 0.1 * jax.random.normal(ks[7], (out_c,), jnp.float32),
    }


def _ref_stage(x_nhwc, wgt, bias, gamma, beta):
    y = lax.conv_general_dilated(
        x_nhwc, wgt, window_strides=(1, 1), padding="SAME",
        dimension_numbers=("NHWC", "HWIO", "NHWC")) + bias
    mean = y.mean(axis=(0, 1, 2))
    var = ((y - mean) ** 2).mean(axis=(0, 1, 2))
    return jnp.maximum(gamma * (y - mean) / jnp.sqrt(var + EPS) + beta, 0.0)


def conv_block_reference(x_nchw, params):
    x = jnp.transpose(x_nchw, (0, 2, 3, 1))
    hid = _ref_stage(x, params["w1"], params["b1"], params["gamma1"], params["beta1"])
    hid = _ref_stage(hid, params["w2"], params["b2"], params["gamma2"], params["beta2"])
    return jnp.transpose(hid, (0, 3, 1, 2))


if __name__ == "__main__":
    key = jax.random.PRNGKey(0)
    k_x, k_p = jax.random.split(key)

    N, in_c, out_c, H, W = 2, 4, 8, 16, 16
    x = jax.random.normal(k_x, (N, in_c, H, W), jnp.float32)   # NCHW, like PyTorch
    params = init_conv_block_params(k_p, in_c, out_c)

    consts = prepare_conv_block_constants(params, W)           # built once, reused per call
    out = jax.block_until_ready(conv_block_forward(x, consts))
    ref = conv_block_reference(x, params)

    assert out.shape == (N, out_c, H, W), out.shape
    max_err = float(jnp.max(jnp.abs(out - ref)))
    # bf16 MXU operands vs. an all-f32 reference across two conv+BN stages.
    assert jnp.allclose(out, ref, atol=6e-2, rtol=6e-2), max_err

    print("KERNEL_OK")
</pallas_src>

<mosaic_0001>
module attributes {stable_mosaic.version = 11 : i64} {
  func.func @_conv_block_kernel(%arg0: memref<32x64xf32, #tpu.memory_space<vmem>>, %arg1: memref<3x64x128xbf16, #tpu.memory_space<vmem>>, %arg2: memref<1x128xf32, #tpu.memory_space<vmem>>, %arg3: memref<1x128xf32, #tpu.memory_space<vmem>>, %arg4: memref<3x128x128xbf16, #tpu.memory_space<vmem>>, %arg5: memref<1x128xf32, #tpu.memory_space<vmem>>, %arg6: memref<1x128xf32, #tpu.memory_space<vmem>>, %arg7: memref<32x128xf32, #tpu.memory_space<vmem>>) attributes {dimension_semantics = [], scalar_prefetch = 0 : i64, scratch_operands = 0 : i64, tpu.core_type = #tpu.core_type<tc>} {
    %c0 = arith.constant 0 : index
    %c0_0 = arith.constant 0 : index
    %0 = vector.load %arg0[%c0, %c0_0] : memref<32x64xf32, #tpu.memory_space<vmem>>, vector<32x64xf32>
    %c0_1 = arith.constant 0 : index
    %c0_2 = arith.constant 0 : index
    %1 = vector.load %arg2[%c0_1, %c0_2] : memref<1x128xf32, #tpu.memory_space<vmem>>, vector<1x128xf32>
    %c0_3 = arith.constant 0 : index
    %c0_4 = arith.constant 0 : index
    %2 = vector.load %arg3[%c0_3, %c0_4] : memref<1x128xf32, #tpu.memory_space<vmem>>, vector<1x128xf32>
    %3 = tpu.iota {dimensions = array<i32: 0>} : vector<32x64xi32>
    %c16_i32 = arith.constant 16 : i32
    %c0_i32 = arith.constant 0 : i32
    %4 = arith.cmpi eq, %c16_i32, %c0_i32 : i32
    %c1_i32 = arith.constant 1 : i32
    %5 = arith.select %4, %c1_i32, %c16_i32 : i32
    %6 = vector.broadcast %5 : i32 to vector<32x64xi32>
    %7 = arith.remsi %3, %6 : vector<32x64xi32>
    %c0_i32_5 = arith.constant 0 : i32
    %8 = vector.broadcast %c0_i32_5 : i32 to vector<32x64xi32>
    %9 = arith.cmpi ne, %7, %8 : vector<32x64xi32>
    %c0_i32_6 = arith.constant 0 : i32
    %10 = vector.broadcast %c0_i32_6 : i32 to vector<32x64xi32>
    %11 = arith.cmpi slt, %7, %10 : vector<32x64xi32>
    %c0_i32_7 = arith.constant 0 : i32
    %12 = arith.cmpi slt, %5, %c0_i32_7 : i32
    %13 = vector.broadcast %12 : i1 to vector<32x64xi1>
    %14 = vector.broadcast %13 : vector<32x64xi1> to vector<32x64xi1>
    %15 = arith.xori %11, %14 : vector<32x64xi1>
    %16 = arith.andi %15, %9 : vector<32x64xi1>
    %17 = vector.broadcast %5 : i32 to vector<32x64xi32>
    %18 = arith.addi %7, %17 : vector<32x64xi32>
    %19 = arith.select %16, %18, %7 : vector<32x64xi1>, vector<32x64xi32>
    %c0_i32_8 = arith.constant 0 : i32
    %20 = vector.broadcast %c0_i32_8 : i32 to vector<32x64xi32>
    %21 = arith.cmpi ne, %19, %20 : vector<32x64xi32>
    %c15_i32 = arith.constant 15 : i32
    %22 = vector.broadcast %c15_i32 : i32 to vector<32x64xi32>
    %23 = arith.cmpi ne, %19, %22 : vector<32x64xi32>
    %cst = arith.constant 0.000000e+00 : f32
    %24 = vector.broadcast %cst : f32 to vector<32x128xf32>
    %c1_i32_9 = arith.constant 1 : i32
    %25 = tpu.dynamic_rotate %0 by %c1_i32_9 dim 0 : vector<32x64xf32>, i32 -> vector<32x64xf32>
    %cst_10 = arith.constant 0.000000e+00 : f32
    %26 = vector.broadcast %cst_10 : f32 to vector<32x64xf32>
    %27 = arith.select %21, %25, %26 : vector<32x64xi1>, vector<32x64xf32>
    %28 = arith.truncf %27 : vector<32x64xf32> to vector<32x64xbf16>
    %c0_11 = arith.constant 0 : index
    %c0_12 = arith.constant 0 : index
    %c0_13 = arith.constant 0 : index
    %29 = vector.load %arg1[%c0_11, %c0_12, %c0_13] : memref<3x64x128xbf16, #tpu.memory_space<vmem>>, vector<1x64x128xbf16>
    %30 = vector.shape_cast %29 : vector<1x64x128xbf16> to vector<64x128xbf16>
    %cst_14 = arith.constant dense<0.000000e+00> : vector<32x128xf32>
    %31 = tpu.matmul %28, %30, %cst_14 {dimension_numbers = #tpu.dot_dimension_numbers<[1], [0], [0], [1], [0, 0, 1, 1], [], []>} : vector<32x64xbf16>, vector<64x128xbf16>, vector<32x128xf32> -> vector<32x128xf32>
    %32 = arith.addf %24, %31 : vector<32x128xf32>
    %33 = arith.truncf %0 : vector<32x64xf32> to vector<32x64xbf16>
    %c1 = arith.constant 1 : index
    %c0_15 = arith.constant 0 : index
    %c0_16 = arith.constant 0 : index
    %34 = vector.load %arg1[%c1, %c0_15, %c0_16] : memref<3x64x128xbf16, #tpu.memory_space<vmem>>, vector<1x64x128xbf16>
    %35 = vector.shape_cast %34 : vector<1x64x128xbf16> to vector<64x128xbf16>
    %cst_17 = arith.constant dense<0.000000e+00> : vector<32x128xf32>
    %36 = tpu.matmul %33, %35, %cst_17 {dimension_numbers = #tpu.dot_dimension_numbers<[1], [0], [0], [1], [0, 0, 1, 1], [], []>} : vector<32x64xbf16>, vector<64x128xbf16>, vector<32x128xf32> -> vector<32x128xf32>
    %37 = arith.addf %32, %36 : vector<32x128xf32>
    %c31_i32 = arith.constant 31 : i32
    %38 = tpu.dynamic_rotate %0 by %c31_i32 dim 0 : vector<32x64xf32>, i32 -> vector<32x64xf32>
    %cst_18 = arith.constant 0.000000e+00 : f32
    %39 = vector.broadcast %cst_18 : f32 to vector<32x64xf32>
    %40 = arith.select %23, %38, %39 : vector<32x64xi1>, vector<32x64xf32>
    %41 = arith.truncf %40 : vector<32x64xf32> to vector<32x64xbf16>
    %c2 = arith.constant 2 : index
    %c0_19 = arith.constant 0 : index
    %c0_20 = arith.constant 0 : index
    %42 = vector.load %arg1[%c2, %c0_19, %c0_20] : memref<3x64x128xbf16, #tpu.memory_space<vmem>>, vector<1x64x128xbf16>
    %43 = vector.shape_cast %42 : vector<1x64x128xbf16> to vector<64x128xbf16>
    %cst_21 = arith.constant dense<0.000000e+00> : vector<32x128xf32>
    %44 = tpu.matmul %41, %43, %cst_21 {dimension_numbers = #tpu.dot_dimension_numbers<[1], [0], [0], [1], [0, 0, 1, 1], [], []>} : vector<32x64xbf16>, vector<64x128xbf16>, vector<32x128xf32> -> vector<32x128xf32>
    %45 = arith.addf %37, %44 : vector<32x128xf32>
    %cst_22 = arith.constant dense<0.000000e+00> : vector<128xf32>
    %46 = vector.multi_reduction <add>, %45, %cst_22 [0] : vector<32x128xf32> to vector<128xf32>
    %47 = vector.shape_cast %46 : vector<128xf32> to vector<1x128xf32>
    %c8_i32 = arith.constant 8 : i32
    %48 = tpu.dynamic_rotate %47 by %c8_i32 dim 1 : vector<1x128xf32>, i32 -> vector<1x128xf32>
    %49 = arith.addf %47, %48 : vector<1x128xf32>
    %c16_i32_23 = arith.constant 16 : i32
    %50 = tpu.dynamic_rotate %49 by %c16_i32_23 dim 1 : vector<1x128xf32>, i32 -> vector<1x128xf32>
    %51 = arith.addf %49, %50 : vector<1x128xf32>
    %c32_i32 = arith.constant 32 : i32
    %52 = tpu.dynamic_rotate %51 by %c32_i32 dim 1 : vector<1x128xf32>, i32 -> vector<1x128xf32>
    %53 = arith.addf %51, %52 : vector<1x128xf32>
    %c64_i32 = arith.constant 64 : i32
    %54 = tpu.dynamic_rotate %53 by %c64_i32 dim 1 : vector<1x128xf32>, i32 -> vector<1x128xf32>
    %55 = arith.addf %53, %54 : vector<1x128xf32>
    %56 = arith.mulf %45, %45 : vector<32x128xf32>
    %cst_24 = arith.constant dense<0.000000e+00> : vector<128xf32>
    %57 = vector.multi_reduction <add>, %56, %cst_24 [0] : vector<32x128xf32> to vector<128xf32>
    %58 = vector.shape_cast %57 : vector<128xf32> to vector<1x128xf32>
    %c8_i32_25 = arith.constant 8 : i32
    %59 = tpu.dynamic_rotate %58 by %c8_i32_25 dim 1 : vector<1x128xf32>, i32 -> vector<1x128xf32>
    %60 = arith.addf %58, %59 : vector<1x128xf32>
    %c16_i32_26 = arith.constant 16 : i32
    %61 = tpu.dynamic_rotate %60 by %c16_i32_26 dim 1 : vector<1x128xf32>, i32 -> vector<1x128xf32>
    %62 = arith.addf %60, %61 : vector<1x128xf32>
    %c32_i32_27 = arith.constant 32 : i32
    %63 = tpu.dynamic_rotate %62 by %c32_i32_27 dim 1 : vector<1x128xf32>, i32 -> vector<1x128xf32>
    %64 = arith.addf %62, %63 : vector<1x128xf32>
    %c64_i32_28 = arith.constant 64 : i32
    %65 = tpu.dynamic_rotate %64 by %c64_i32_28 dim 1 : vector<1x128xf32>, i32 -> vector<1x128xf32>
    %66 = arith.addf %64, %65 : vector<1x128xf32>
    %cst_29 = arith.constant 0.001953125 : f32
    %67 = vector.broadcast %cst_29 : f32 to vector<1x128xf32>
    %68 = arith.mulf %55, %67 : vector<1x128xf32>
    %cst_30 = arith.constant 0.001953125 : f32
    %69 = vector.broadcast %cst_30 : f32 to vector<1x128xf32>
    %70 = arith.mulf %66, %69 : vector<1x128xf32>
    %71 = arith.mulf %68, %68 : vector<1x128xf32>
    %72 = arith.subf %70, %71 : vector<1x128xf32>
    %cst_31 = arith.constant 0.000000e+00 : f32
    %73 = vector.broadcast %cst_31 : f32 to vector<1x128xf32>
    %74 = arith.maximumf %72, %73 : vector<1x128xf32>
    %cst_32 = arith.constant 9.99999974E-6 : f32
    %75 = vector.broadcast %cst_32 : f32 to vector<1x128xf32>
    %76 = arith.addf %74, %75 : vector<1x128xf32>
    %77 = math.rsqrt %76 : vector<1x128xf32>
    %78 = arith.mulf %1, %77 : vector<1x128xf32>
    %79 = arith.mulf %78, %68 : vector<1x128xf32>
    %80 = arith.subf %2, %79 : vector<1x128xf32>
    %81 = vector.broadcast %78 : vector<1x128xf32> to vector<32x128xf32>
    %82 = arith.mulf %45, %81 : vector<32x128xf32>
    %83 = vector.broadcast %80 : vector<1x128xf32> to vector<32x128xf32>
    %84 = arith.addf %82, %83 : vector<32x128xf32>
    %cst_33 = arith.constant 0.000000e+00 : f32
    %85 = vector.broadcast %cst_33 : f32 to vector<32x128xf32>
    %86 = arith.maximumf %84, %85 : vector<32x128xf32>
    %c0_34 = arith.constant 0 : index
    %c0_35 = arith.constant 0 : index
    %87 = vector.load %arg5[%c0_34, %c0_35] : memref<1x128xf32, #tpu.memory_space<vmem>>, vector<1x128xf32>
    %c0_36 = arith.constant 0 : index
    %c0_37 = arith.constant 0 : index
    %88 = vector.load %arg6[%c0_36, %c0_37] : memref<1x128xf32, #tpu.memory_space<vmem>>, vector<1x128xf32>
    %89 = tpu.iota {dimensions = array<i32: 0>} : vector<32x128xi32>
    %c16_i32_38 = arith.constant 16 : i32
    %c0_i32_39 = arith.constant 0 : i32
    %90 = arith.cmpi eq, %c16_i32_38, %c0_i32_39 : i32
    %c1_i32_40 = arith.constant 1 : i32
    %91 = arith.select %90, %c1_i32_40, %c16_i32_38 : i32
    %92 = vector.broadcast %91 : i32 to vector<32x128xi32>
    %93 = arith.remsi %89, %92 : vector<32x128xi32>
    %c0_i32_41 = arith.constant 0 : i32
    %94 = vector.broadcast %c0_i32_41 : i32 to vector<32x128xi32>
    %95 = arith.cmpi ne, %93, %94 : vector<32x128xi32>
    %c0_i32_42 = arith.constant 0 : i32
    %96 = vector.broadcast %c0_i32_42 : i32 to vector<32x128xi32>
    %97 = arith.cmpi slt, %93, %96 : vector<32x128xi32>
    %c0_i32_43 = arith.constant 0 : i32
    %98 = arith.cmpi slt, %91, %c0_i32_43 : i32
    %99 = vector.broadcast %98 : i1 to vector<32x128xi1>
    %100 = vector.broadcast %99 : vector<32x128xi1> to vector<32x128xi1>
    %101 = arith.xori %97, %100 : vector<32x128xi1>
    %102 = arith.andi %101, %95 : vector<32x128xi1>
    %103 = vector.broadcast %91 : i32 to vector<32x128xi32>
    %104 = arith.addi %93, %103 : vector<32x128xi32>
    %105 = arith.select %102, %104, %93 : vector<32x128xi1>, vector<32x128xi32>
    %c0_i32_44 = arith.constant 0 : i32
    %106 = vector.broadcast %c0_i32_44 : i32 to vector<32x128xi32>
    %107 = arith.cmpi ne, %105, %106 : vector<32x128xi32>
    %c15_i32_45 = arith.constant 15 : i32
    %108 = vector.broadcast %c15_i32_45 : i32 to vector<32x128xi32>
    %109 = arith.cmpi ne, %105, %108 : vector<32x128xi32>
    %cst_46 = arith.constant 0.000000e+00 : f32
    %110 = vector.broadcast %cst_46 : f32 to vector<32x128xf32>
    %c1_i32_47 = arith.constant 1 : i32
    %111 = tpu.dynamic_rotate %86 by %c1_i32_47 dim 0 : vector<32x128xf32>, i32 -> vector<32x128xf32>
    %cst_48 = arith.constant 0.000000e+00 : f32
    %112 = vector.broadcast %cst_48 : f32 to vector<32x128xf32>
    %113 = arith.select %107, %111, %112 : vector<32x128xi1>, vector<32x128xf32>
    %114 = arith.truncf %113 : vector<32x128xf32> to vector<32x128xbf16>
    %c0_49 = arith.constant 0 : index
    %c0_50 = arith.constant 0 : index
    %c0_51 = arith.constant 0 : index
    %115 = vector.load %arg4[%c0_49, %c0_50, %c0_51] : memref<3x128x128xbf16, #tpu.memory_space<vmem>>, vector<1x128x128xbf16>
    %116 = vector.shape_cast %115 : vector<1x128x128xbf16> to vector<128x128xbf16>
    %cst_52 = arith.constant dense<0.000000e+00> : vector<32x128xf32>
    %117 = tpu.matmul %114, %116, %cst_52 {dimension_numbers = #tpu.dot_dimension_numbers<[1], [0], [0], [1], [0, 0, 1, 1], [], []>} : vector<32x128xbf16>, vector<128x128xbf16>, vector<32x128xf32> -> vector<32x128xf32>
    %118 = arith.addf %110, %117 : vector<32x128xf32>
    %119 = arith.truncf %86 : vector<32x128xf32> to vector<32x128xbf16>
    %c1_53 = arith.constant 1 : index
    %c0_54 = arith.constant 0 : index
    %c0_55 = arith.constant 0 : index
    %120 = vector.load %arg4[%c1_53, %c0_54, %c0_55] : memref<3x128x128xbf16, #tpu.memory_space<vmem>>, vector<1x128x128xbf16>
    %121 = vector.shape_cast %120 : vector<1x128x128xbf16> to vector<128x128xbf16>
    %cst_56 = arith.constant dense<0.000000e+00> : vector<32x128xf32>
    %122 = tpu.matmul %119, %121, %cst_56 {dimension_numbers = #tpu.dot_dimension_numbers<[1], [0], [0], [1], [0, 0, 1, 1], [], []>} : vector<32x128xbf16>, vector<128x128xbf16>, vector<32x128xf32> -> vector<32x128xf32>
    %123 = arith.addf %118, %122 : vector<32x128xf32>
    %c31_i32_57 = arith.constant 31 : i32
    %124 = tpu.dynamic_rotate %86 by %c31_i32_57 dim 0 : vector<32x128xf32>, i32 -> vector<32x128xf32>
    %cst_58 = arith.constant 0.000000e+00 : f32
    %125 = vector.broadcast %cst_58 : f32 to vector<32x128xf32>
    %126 = arith.select %109, %124, %125 : vector<32x128xi1>, vector<32x128xf32>
    %127 = arith.truncf %126 : vector<32x128xf32> to vector<32x128xbf16>
    %c2_59 = arith.constant 2 : index
    %c0_60 = arith.constant 0 : index
    %c0_61 = arith.constant 0 : index
    %128 = vector.load %arg4[%c2_59, %c0_60, %c0_61] : memref<3x128x128xbf16, #tpu.memory_space<vmem>>, vector<1x128x128xbf16>
    %129 = vector.shape_cast %128 : vector<1x128x128xbf16> to vector<128x128xbf16>
    %cst_62 = arith.constant dense<0.000000e+00> : vector<32x128xf32>
    %130 = tpu.matmul %127, %129, %cst_62 {dimension_numbers = #tpu.dot_dimension_numbers<[1], [0], [0], [1], [0, 0, 1, 1], [], []>} : vector<32x128xbf16>, vector<128x128xbf16>, vector<32x128xf32> -> vector<32x128xf32>
    %131 = arith.addf %123, %130 : vector<32x128xf32>
    %cst_63 = arith.constant dense<0.000000e+00> : vector<128xf32>
    %132 = vector.multi_reduction <add>, %131, %cst_63 [0] : vector<32x128xf32> to vector<128xf32>
    %133 = vector.shape_cast %132 : vector<128xf32> to vector<1x128xf32>
    %c8_i32_64 = arith.constant 8 : i32
    %134 = tpu.dynamic_rotate %133 by %c8_i32_64 dim 1 : vector<1x128xf32>, i32 -> vector<1x128xf32>
    %135 = arith.addf %133, %134 : vector<1x128xf32>
    %c16_i32_65 = arith.constant 16 : i32
    %136 = tpu.dynamic_rotate %135 by %c16_i32_65 dim 1 : vector<1x128xf32>, i32 -> vector<1x128xf32>
    %137 = arith.addf %135, %136 : vector<1x128xf32>
    %c32_i32_66 = arith.constant 32 : i32
    %138 = tpu.dynamic_rotate %137 by %c32_i32_66 dim 1 : vector<1x128xf32>, i32 -> vector<1x128xf32>
    %139 = arith.addf %137, %138 : vector<1x128xf32>
    %c64_i32_67 = arith.constant 64 : i32
    %140 = tpu.dynamic_rotate %139 by %c64_i32_67 dim 1 : vector<1x128xf32>, i32 -> vector<1x128xf32>
    %141 = arith.addf %139, %140 : vector<1x128xf32>
    %142 = arith.mulf %131, %131 : vector<32x128xf32>
    %cst_68 = arith.constant dense<0.000000e+00> : vector<128xf32>
    %143 = vector.multi_reduction <add>, %142, %cst_68 [0] : vector<32x128xf32> to vector<128xf32>
    %144 = vector.shape_cast %143 : vector<128xf32> to vector<1x128xf32>
    %c8_i32_69 = arith.constant 8 : i32
    %145 = tpu.dynamic_rotate %144 by %c8_i32_69 dim 1 : vector<1x128xf32>, i32 -> vector<1x128xf32>
    %146 = arith.addf %144, %145 : vector<1x128xf32>
    %c16_i32_70 = arith.constant 16 : i32
    %147 = tpu.dynamic_rotate %146 by %c16_i32_70 dim 1 : vector<1x128xf32>, i32 -> vector<1x128xf32>
    %148 = arith.addf %146, %147 : vector<1x128xf32>
    %c32_i32_71 = arith.constant 32 : i32
    %149 = tpu.dynamic_rotate %148 by %c32_i32_71 dim 1 : vector<1x128xf32>, i32 -> vector<1x128xf32>
    %150 = arith.addf %148, %149 : vector<1x128xf32>
    %c64_i32_72 = arith.constant 64 : i32
    %151 = tpu.dynamic_rotate %150 by %c64_i32_72 dim 1 : vector<1x128xf32>, i32 -> vector<1x128xf32>
    %152 = arith.addf %150, %151 : vector<1x128xf32>
    %cst_73 = arith.constant 0.001953125 : f32
    %153 = vector.broadcast %cst_73 : f32 to vector<1x128xf32>
    %154 = arith.mulf %141, %153 : vector<1x128xf32>
    %cst_74 = arith.constant 0.001953125 : f32
    %155 = vector.broadcast %cst_74 : f32 to vector<1x128xf32>
    %156 = arith.mulf %152, %155 : vector<1x128xf32>
    %157 = arith.mulf %154, %154 : vector<1x128xf32>
    %158 = arith.subf %156, %157 : vector<1x128xf32>
    %cst_75 = arith.constant 0.000000e+00 : f32
    %159 = vector.broadcast %cst_75 : f32 to vector<1x128xf32>
    %160 = arith.maximumf %158, %159 : vector<1x128xf32>
    %cst_76 = arith.constant 9.99999974E-6 : f32
    %161 = vector.broadcast %cst_76 : f32 to vector<1x128xf32>
    %162 = arith.addf %160, %161 : vector<1x128xf32>
    %163 = math.rsqrt %162 : vector<1x128xf32>
    %164 = arith.mulf %87, %163 : vector<1x128xf32>
    %165 = arith.mulf %164, %154 : vector<1x128xf32>
    %166 = arith.subf %88, %165 : vector<1x128xf32>
    %167 = vector.broadcast %164 : vector<1x128xf32> to vector<32x128xf32>
    %168 = arith.mulf %131, %167 : vector<32x128xf32>
    %169 = vector.broadcast %166 : vector<1x128xf32> to vector<32x128xf32>
    %170 = arith.addf %168, %169 : vector<32x128xf32>
    %cst_77 = arith.constant 0.000000e+00 : f32
    %171 = vector.broadcast %cst_77 : f32 to vector<32x128xf32>
    %172 = arith.maximumf %170, %171 : vector<32x128xf32>
    %c0_78 = arith.constant 0 : index
    %c0_79 = arith.constant 0 : index
    %173 = vector.load %arg7[%c0_78, %c0_79] : memref<32x128xf32, #tpu.memory_space<vmem>>, vector<32x128xf32>
    tpu.vector_store %arg7[%c0_78, %c0_79], %172 {strides = array<i32>} : memref<32x128xf32, #tpu.memory_space<vmem>>, vector<32x128xf32>,
    return
  }
}

</mosaic_0001>

<llo_original>
// kernel: conv_block_forward.1
$region0: #{conv_block_forward.1}
  #allocation0 [shape = 'u32[]', space=smem, size = 0x4, offset = 0x4, fixed_abs, tag = 'smem constant byte address 0x4 - core index']
  #allocation1 [shape = 'u32[144,128]{1,0:T(1,128)}', space=vmem, size = 0x12000, scoped, tag = 'internal scratch']
  %s0 = inlined_call_operand.vmem [shape: f32[32,64], index: 0, kind: input, shape index: {}]
  %s1 = inlined_call_operand.vmem [shape: bf16[3,64,128], index: 1, kind: input, shape index: {}]
  %s2 = inlined_call_operand.vmem [shape: f32[1,128], index: 2, kind: input, shape index: {}]
  %s3 = inlined_call_operand.vmem [shape: f32[1,128], index: 3, kind: input, shape index: {}]
  %s4 = inlined_call_operand.vmem [shape: bf16[3,128,128], index: 4, kind: input, shape index: {}]
  %s5 = inlined_call_operand.vmem [shape: f32[1,128], index: 5, kind: input, shape index: {}]
  %s6 = inlined_call_operand.vmem [shape: f32[1,128], index: 6, kind: input, shape index: {}]
  %s7 = inlined_call_operand.vmem [shape: f32[32,128], index: 7, kind: output, shape index: {}]
  %s8 = sld [smem:[#allocation0]]
  $region38: #{conv_block_forward.1} parent=0
    _
  %s10 = ssub.s32 1, %s8
  %s11 = scalar_select 0, %s10, %s8
  // Predicated region
  $region2: #{conv_block_forward.1} parent=0 // pred_check
    _
  $region3: #{conv_block_forward.1} parent=0 // pred_check_branch
    %13 = sbr.rel (0) target = $region5
  $region4: #{conv_block_forward.1} parent=0 // pred_region
    _
  $region5: #{conv_block_forward.1} parent=0 // pred_fallthru
    _
  // Predicated region
  $region6: #{conv_block_forward.1} parent=0 // pred_check
    _
  $region7: #{conv_block_forward.1} parent=0 // pred_check_branch
    %15 = sbr.rel (0) target = $region9
  $region8: #{conv_block_forward.1} parent=0 // pred_region
    _
  $region9: #{conv_block_forward.1} parent=0 // pred_fallthru
    _
  // Predicated region
  $region10: #{conv_block_forward.1} parent=0 // pred_check
    _
  $region11: #{conv_block_forward.1} parent=0 // pred_check_branch
    %17 = sbr.rel (0) target = $region13
  $region12: #{conv_block_forward.1} parent=0 // pred_region
    _
  $region13: #{conv_block_forward.1} parent=0 // pred_fallthru
    _
  // Predicated region
  $region14: #{conv_block_forward.1} parent=0 // pred_check
    _
  $region15: #{conv_block_forward.1} parent=0 // pred_check_branch
    %19 = sbr.rel (0) target = $region17
  $region16: #{conv_block_forward.1} parent=0 // pred_region
    _
  $region17: #{conv_block_forward.1} parent=0 // pred_fallthru
    _
  // Predicated region
  $region18: #{conv_block_forward.1} parent=0 // pred_check
    _
  $region19: #{conv_block_forward.1} parent=0 // pred_check_branch
    %21 = sbr.rel (0) target = $region21
  $region20: #{conv_block_forward.1} parent=0 // pred_region
    _
  $region21: #{conv_block_forward.1} parent=0 // pred_fallthru
    _
  // Predicated region
  $region22: #{conv_block_forward.1} parent=0 // pred_check
    _
  $region23: #{conv_block_forward.1} parent=0 // pred_check_branch
    %23 = sbr.rel (0) target = $region25
  $region24: #{conv_block_forward.1} parent=0 // pred_region
    _
  $region25: #{conv_block_forward.1} parent=0 // pred_fallthru
    _
  // Predicated region
  $region26: #{conv_block_forward.1} parent=0 // pred_check
    _
  $region27: #{conv_block_forward.1} parent=0 // pred_check_branch
    %25 = sbr.rel (0) target = $region29
  $region28: #{conv_block_forward.1} parent=0 // pred_region
    _
  $region29: #{conv_block_forward.1} parent=0 // pred_fallthru
    _
  %v27 = vld [vmem:[%s0] sm:$0xff]
  %v28 = vld [vmem:[%s0 + $0x8] sm:$0xff]
  %v29 = vld [vmem:[%s0 + $0x10] sm:$0xff]
  %v30 = vld [vmem:[%s0 + $0x18] sm:$0xff]
  %v31 = vld [vmem:[%s2] sm:$0x1]
  %v32 = vld [vmem:[%s3] sm:$0x1]
  %v33 = vlaneseq
  %v34 = vshrl.u32 %v33, 7
  %v35 = vadd.s32 %v34, 8
  %v36 = vadd.s32 %v34, 16
  %v37 = vadd.s32 %v34, 24
  %vm38 = vcmp.lt.s32.totalorder %v34, 0
  %v39 = vsub.s32 0, %v34
  %v40 = vsel %vm38, %v39, %v34
  %v41 = vshrl.u32 %v40, 4
  %v42 = vand.u32 %v40, 15
  %v43 = vsub.s32 0, %v42
  %v44 = vsel %vm38, %v43, %v42
  %vm45 = vcmp.lt.s32.totalorder %v35, 0
  %v46 = vsub.s32 0, %v35
  %v47 = vsel %vm45, %v46, %v35
  %v48 = vshrl.u32 %v47, 4
  %v49 = vand.u32 %v47, 15
  %v50 = vsub.s32 0, %v49
  %v51 = vsel %vm45, %v50, %v49
  %vm52 = vcmp.lt.s32.totalorder %v36, 0
  %v53 = vsub.s32 0, %v36
  %v54 = vsel %vm52, %v53, %v36
  %v55 = vshrl.u32 %v54, 4
  %v56 = vand.u32 %v54, 15
  %v57 = vsub.s32 0, %v56
  %v58 = vsel %vm52, %v57, %v56
  %vm59 = vcmp.lt.s32.totalorder %v37, 0
  %v60 = vsub.s32 0, %v37
  %v61 = vsel %vm59, %v60, %v37
  %v62 = vshrl.u32 %v61, 4
  %v63 = vand.u32 %v61, 15
  %v64 = vsub.s32 0, %v63
  %v65 = vsel %vm59, %v64, %v63
  %vm66 = vcmp.ne.s32.totalorder %v44, 0
  %vm67 = vcmp.ne.s32.totalorder %v51, 0
  %vm68 = vcmp.ne.s32.totalorder %v58, 0
  %vm69 = vcmp.ne.s32.totalorder %v65, 0
  %vm70 = vcmp.lt.s32.totalorder %v44, 0
  %vm71 = vcmp.lt.s32.totalorder %v51, 0
  %vm72 = vcmp.lt.s32.totalorder %v58, 0
  %vm73 = vcmp.lt.s32.totalorder %v65, 0
  %vm74 = vmand %vm70, %vm66
  %vm75 = vmand %vm71, %vm67
  %vm76 = vmand %vm72, %vm68
  %vm77 = vmand %vm73, %vm69
  %v78 = vadd.s32 %v44, 16
  %v79 = vadd.s32 %v51, 16
  %v80 = vadd.s32 %v58, 16
  %v81 = vadd.s32 %v65, 16
  %v82 = vsel %vm74, %v78, %v44
  %v83 = vsel %vm75, %v79, %v51
  %v84 = vsel %vm76, %v80, %v58
  %v85 = vsel %vm77, %v81, %v65
  %vm86 = vcmp.ne.s32.totalorder %v82, 0
  %vm87 = vcmp.ne.s32.totalorder %v83, 0
  %vm88 = vcmp.ne.s32.totalorder %v84, 0
  %vm89 = vcmp.ne.s32.totalorder %v85, 0
  %vm90 = vcmp.ne.s32.totalorder %v82, 15
  %vm91 = vcmp.ne.s32.totalorder %v83, 15
  %vm92 = vcmp.ne.s32.totalorder %v84, 15
  %vm93 = vcmp.ne.s32.totalorder %v85, 15
  %v94 = vrot.slane %v27, 7
  %v95 = vrot.slane %v28, 7
  %v96 = vrot.slane %v29, 7
  %v97 = vrot.slane %v30, 7
  %vm98 = vcmp.lt.s32.totalorder %v34, 1
  %v99 = vsel %vm98, %v96, %v97
  %v100 = vsel %vm98, %v95, %v96
  %v101 = vsel %vm98, %v94, %v95
  %v102 = vsel %vm98, %v97, %v94
  %v103 = vsel %vm86, %v102, 0.0
  %v104 = vsel %vm87, %v101, 0.0
  %v105 = vsel %vm88, %v100, 0.0
  %v106 = vsel %vm89, %v99, 0.0
  %v107 = vpack.c.bf16 %v104, %v103
  %v108 = vpack.c.bf16 %v106, %v105
  %v109 = vld [vmem:[%s1] sm:$0xf]
  %v110 = vld [vmem:[%s1 + $0x4] sm:$0xf]
  %v111 = vld [vmem:[%s1 + $0x8] sm:$0xf]
  %v112 = vld [vmem:[%s1 + $0xc] sm:$0xf]
  %v113 = vld [vmem:[%s1 + $0x10] sm:$0xf]
  %v114 = vld [vmem:[%s1 + $0x14] sm:$0xf]
  %v115 = vld [vmem:[%s1 + $0x18] sm:$0xf]
  %v116 = vld [vmem:[%s1 + $0x1c] sm:$0xf]
  %v117 = vpack.c.bf16 %v28, %v27
  %v118 = vpack.c.bf16 %v30, %v29
  %s119 = scalar_lea.vmem %s1, 32
  %v120 = vld [vmem:[%s119] sm:$0xf]
  %v121 = vld [vmem:[%s119 + $0x4] sm:$0xf]
  %v122 = vld [vmem:[%s119 + $0x8] sm:$0xf]
  %v123 = vld [vmem:[%s119 + $0xc] sm:$0xf]
  %v124 = vld [vmem:[%s119 + $0x10] sm:$0xf]
  %v125 = vld [vmem:[%s119 + $0x14] sm:$0xf]
  %v126 = vld [vmem:[%s119 + $0x18] sm:$0xf]
  %v127 = vld [vmem:[%s119 + $0x1c] sm:$0xf]
  %v136 = vunpack.c.l.b16 %v120
  %v137 = vunpack.c.l.b16 %v121
  %v138 = vunpack.c.l.b16 %v122
  %v139 = vunpack.c.l.b16 %v123
  %v140 = vunpack.c.l.b16 %v124
  %v141 = vunpack.c.l.b16 %v125
  %v142 = vunpack.c.l.b16 %v126
  %v143 = vunpack.c.l.b16 %v127
  %v144 = vpack.c.b16 %v137, %v136
  %v145 = vpack.c.b16 %v139, %v138
  %v146 = vpack.c.b16 %v141, %v140
  %v147 = vpack.c.b16 %v143, %v142
  %vm152 = vcmask 523264
  %v154 = vsel %vm152, %v117, 0
  %v157 = vsel %vm152, %v118, 0
  %159 = vmatprep.subr.bf16.mxu0 0
  %160 = vmatpush1.bf16.msra.mxu0 %v144
  %161 = vmatprep.subr.bf16.mxu0 0
  %162 = vmatpush1.bf16.msra.mxu0 %v145
  %163 = vmatprep.subr.bf16.mxu0 0
  %164 = vmatpush1.bf16.msra.mxu0 %v146
  %165 = vmatprep.subr.bf16.mxu0 0
  %166 = vmatpush1.bf16.msra.mxu0 %v147
  %167 = vmatprep.subr.bf16.mxu0 0
  %168 = vmatpush1.bf16.msra.mxu0 0
  %169 = vmatprep.subr.bf16.mxu0 0
  %170 = vmatpush1.bf16.msra.mxu0 0
  %171 = vmatprep.subr.bf16.mxu0 0
  %172 = vmatpush1.bf16.msra.mxu0 0
  %173 = vmatprep.subr.bf16.mxu0 0
  %174 = vmatpush1.bf16.msra.mxu0 0
  %175 = vmatprep.subr.bf16.mxu0 0
  %176 = vmatpush1.bf16.msra.mxu0 0
  %177 = vmatprep.subr.bf16.mxu0 0
  %178 = vmatpush1.bf16.msra.mxu0 0
  %179 = vmatprep.subr.bf16.mxu0 0
  %180 = vmatpush1.bf16.msra.mxu0 0
  %181 = vmatprep.subr.bf16.mxu0 0
  %182 = vmatpush1.bf16.msra.mxu0 0
  %183 = vmatprep.subr.bf16.mxu0 0
  %184 = vmatpush1.bf16.msra.mxu0 0
  %185 = vmatprep.subr.bf16.mxu0 0
  %186 = vmatpush1.bf16.msra.mxu0 0
  %187 = vmatprep.subr.bf16.mxu0 0
  %188 = vmatpush1.bf16.msra.mxu0 0
  %189 = vmatprep.subr.bf16.mxu0 0
  %190 = vmatpush1.bf16.msra.mxu0 0
  %191 = vmatprep.mubr.bf16.mxu0 0
  %192 = vmatmul.mubr.bf16.gmra.mrb[0].mxu0 %v154
  %v193 = vpop.f32.mrb[0].mxu0
  %v194 = vadd.f32 0.0, %v193
  %v195 = vpop.f32.mrb[0].mxu0
  %v196 = vpop.f32.mrb[0].mxu0
  %v197 = vadd.f32 0.0, %v196
  %v198 = vpop.f32.mrb[0].mxu0
  %199 = vmatprep.mubr.bf16.mxu0 0
  %200 = vmatmul.mubr.bf16.gmra.mrb[0].mxu0 %v157
  %v201 = vpop.f32.mrb[0].mxu0
  %v202 = vadd.f32 0.0, %v201
  %v203 = vpop.f32.mrb[0].mxu0
  %v204 = vpop.f32.mrb[0].mxu0
  %v205 = vadd.f32 0.0, %v204
  %v206 = vpop.f32.mrb[0].mxu0
  %207 = vdwg.mxu0
  %v216 = vunpack.c.l.b16 %v109
  %v217 = vunpack.c.l.b16 %v110
  %v218 = vunpack.c.l.b16 %v111
  %v219 = vunpack.c.l.b16 %v112
  %v220 = vunpack.c.l.b16 %v113
  %v221 = vunpack.c.l.b16 %v114
  %v222 = vunpack.c.l.b16 %v115
  %v223 = vunpack.c.l.b16 %v116
  %v224 = vpack.c.b16 %v217, %v216
  %v225 = vpack.c.b16 %v219, %v218
  %v226 = vpack.c.b16 %v221, %v220
  %v227 = vpack.c.b16 %v223, %v222
  %v233 = vsel %vm152, %v107, 0
  %v236 = vsel %vm152, %v108, 0
  %238 = vmatprep.subr.bf16.mxu0 0
  %239 = vmatpush1.bf16.msra.mxu0 %v224
  %240 = vmatprep.subr.bf16.mxu0 0
  %241 = vmatpush1.bf16.msra.mxu0 %v225
  %242 = vmatprep.subr.bf16.mxu0 0
  %243 = vmatpush1.bf16.msra.mxu0 %v226
  %244 = vmatprep.subr.bf16.mxu0 0
  %245 = vmatpush1.bf16.msra.mxu0 %v227
  %246 = vmatprep.subr.bf16.mxu0 0
  %247 = vmatpush1.bf16.msra.mxu0 0
  %248 = vmatprep.subr.bf16.mxu0 0
  %249 = vmatpush1.bf16.msra.mxu0 0
  %250 = vmatprep.subr.bf16.mxu0 0
  %251 = vmatpush1.bf16.msra.mxu0 0
  %252 = vmatprep.subr.bf16.mxu0 0
  %253 = vmatpush1.bf16.msra.mxu0 0
  %254 = vmatprep.subr.bf16.mxu0 0
  %255 = vmatpush1.bf16.msra.mxu0 0
  %256 = vmatprep.subr.bf16.mxu0 0
  %257 = vmatpush1.bf16.msra.mxu0 0
  %258 = vmatprep.subr.bf16.mxu0 0
  %259 = vmatpush1.bf16.msra.mxu0 0
  %260 = vmatprep.subr.bf16.mxu0 0
  %261 = vmatpush1.bf16.msra.mxu0 0
  %262 = vmatprep.subr.bf16.mxu0 0
  %263 = vmatpush1.bf16.msra.mxu0 0
  %264 = vmatprep.subr.bf16.mxu0 0
  %265 = vmatpush1.bf16.msra.mxu0 0
  %266 = vmatprep.subr.bf16.mxu0 0
  %267 = vmatpush1.bf16.msra.mxu0 0
  %268 = vmatprep.subr.bf16.mxu0 0
  %269 = vmatpush1.bf16.msra.mxu0 0
  %270 = vmatprep.mubr.bf16.mxu0 0
  %271 = vmatmul.mubr.bf16.gmra.mrb[0].mxu0 %v233
  %v272 = vpop.f32.mrb[0].mxu0
  %v273 = vadd.f32 %v194, %v272
  %v274 = vpop.f32.mrb[0].mxu0
  %v275 = vpop.f32.mrb[0].mxu0
  %v276 = vadd.f32 %v197, %v275
  %v277 = vpop.f32.mrb[0].mxu0
  %278 = vmatprep.mubr.bf16.mxu0 0
  %279 = vmatmul.mubr.bf16.gmra.mrb[0].mxu0 %v236
  %v280 = vpop.f32.mrb[0].mxu0
  %v281 = vadd.f32 %v202, %v280
  %v282 = vpop.f32.mrb[0].mxu0
  %v283 = vpop.f32.mrb[0].mxu0
  %v284 = vadd.f32 %v205, %v283
  %v285 = vpop.f32.mrb[0].mxu0
  %286 = vdwg.mxu0
  %v287 = vrot.slane %v27, 1
  %v288 = vrot.slane %v28, 1
  %v289 = vrot.slane %v29, 1
  %v290 = vrot.slane %v30, 1
  %vm291 = vcmp.lt.s32.totalorder %v34, 7
  %v292 = vsel %vm291, %v289, %v290
  %v293 = vsel %vm291, %v288, %v289
  %v294 = vsel %vm291, %v287, %v288
  %v295 = vsel %vm291, %v290, %v287
  %v296 = vsel %vm90, %v294, 0.0
  %v297 = vsel %vm91, %v293, 0.0
  %v298 = vsel %vm92, %v292, 0.0
  %v299 = vsel %vm93, %v295, 0.0
  %v300 = vpack.c.bf16 %v297, %v296
  %v301 = vpack.c.bf16 %v299, %v298
  %s302 = scalar_lea.vmem %s1, 64
  %v303 = vld [vmem:[%s302] sm:$0xf]
  %v304 = vld [vmem:[%s302 + $0x4] sm:$0xf]
  %v305 = vld [vmem:[%s302 + $0x8] sm:$0xf]
  %v306 = vld [vmem:[%s302 + $0xc] sm:$0xf]
  %v307 = vld [vmem:[%s302 + $0x10] sm:$0xf]
  %v308 = vld [vmem:[%s302 + $0x14] sm:$0xf]
  %v309 = vld [vmem:[%s302 + $0x18] sm:$0xf]
  %v310 = vld [vmem:[%s302 + $0x1c] sm:$0xf]
  %v319 = vunpack.c.l.b16 %v303
  %v320 = vunpack.c.l.b16 %v304
  %v321 = vunpack.c.l.b16 %v305
  %v322 = vunpack.c.l.b16 %v306
  %v323 = vunpack.c.l.b16 %v307
  %v324 = vunpack.c.l.b16 %v308
  %v325 = vunpack.c.l.b16 %v309
  %v326 = vunpack.c.l.b16 %v310
  %v327 = vpack.c.b16 %v320, %v319
  %v328 = vpack.c.b16 %v322, %v321
  %v329 = vpack.c.b16 %v324, %v323
  %v330 = vpack.c.b16 %v326, %v325
  %v336 = vsel %vm152, %v300, 0
  %v339 = vsel %vm152, %v301, 0
  %341 = vmatprep.subr.bf16.mxu0 0
  %342 = vmatpush1.bf16.msra.mxu0 %v327
  %343 = vmatprep.subr.bf16.mxu0 0
  %344 = vmatpush1.bf16.msra.mxu0 %v328
  %345 = vmatprep.subr.bf16.mxu0 0
  %346 = vmatpush1.bf16.msra.mxu0 %v329
  %347 = vmatprep.subr.bf16.mxu0 0
  %348 = vmatpush1.bf16.msra.mxu0 %v330
  %349 = vmatprep.subr.bf16.mxu0 0
  %350 = vmatpush1.bf16.msra.mxu0 0
  %351 = vmatprep.subr.bf16.mxu0 0
  %352 = vmatpush1.bf16.msra.mxu0 0
  %353 = vmatprep.subr.bf16.mxu0 0
  %354 = vmatpush1.bf16.msra.mxu0 0
  %355 = vmatprep.subr.bf16.mxu0 0
  %356 = vmatpush1.bf16.msra.mxu0 0
  %357 = vmatprep.subr.bf16.mxu0 0
  %358 = vmatpush1.bf16.msra.mxu0 0
  %359 = vmatprep.subr.bf16.mxu0 0
  %360 = vmatpush1.bf16.msra.mxu0 0
  %361 = vmatprep.subr.bf16.mxu0 0
  %362 = vmatpush1.bf16.msra.mxu0 0
  %363 = vmatprep.subr.bf16.mxu0 0
  %364 = vmatpush1.bf16.msra.mxu0 0
  %365 = vmatprep.subr.bf16.mxu0 0
  %366 = vmatpush1.bf16.msra.mxu0 0
  %367 = vmatprep.subr.bf16.mxu0 0
  %368 = vmatpush1.bf16.msra.mxu0 0
  %369 = vmatprep.subr.bf16.mxu0 0
  %370 = vmatpush1.bf16.msra.mxu0 0
  %371 = vmatprep.subr.bf16.mxu0 0
  %372 = vmatpush1.bf16.msra.mxu0 0
  %373 = vmatprep.mubr.bf16.mxu0 0
  %374 = vmatmul.mubr.bf16.gmra.mrb[0].mxu0 %v336
  %v375 = vpop.f32.mrb[0].mxu0
  %v376 = vadd.f32 0.0, %v375
  %v377 = vpop.f32.mrb[0].mxu0
  %v378 = vpop.f32.mrb[0].mxu0
  %v379 = vadd.f32 0.0, %v378
  %v380 = vpop.f32.mrb[0].mxu0
  %381 = vmatprep.mubr.bf16.mxu0 0
  %382 = vmatmul.mubr.bf16.gmra.mrb[0].mxu0 %v339
  %v383 = vpop.f32.mrb[0].mxu0
  %v384 = vadd.f32 0.0, %v383
  %v385 = vpop.f32.mrb[0].mxu0
  %v386 = vpop.f32.mrb[0].mxu0
  %v387 = vadd.f32 0.0, %v386
  %v388 = vpop.f32.mrb[0].mxu0
  %389 = vdwg.mxu0
  %v390 = vadd.f32 %v273, %v376
  %v391 = vadd.f32 %v276, %v379
  %v392 = vadd.f32 %v281, %v384
  %v393 = vadd.f32 %v284, %v387
  %v394 = vadd.f32 %v390, %v391
  %v395 = vadd.f32 %v394, %v392
  %v396 = vadd.f32 %v395, %v393
  %v397 = vrot.slane %v396, 4
  %v398 = vadd.f32 %v396, %v397
  %v399 = vrot.slane %v398, 2
  %v400 = vadd.f32 %v398, %v399
  %v401 = vrot.slane %v400, 1
  %v402 = vadd.f32 %v400, %v401
  %403 = vrot.lane.b32.xlu0 %v402, 8
  %v404 = vpop.permute.xlu0 %403
  %v405 = vadd.f32 %v402, %v404
  %406 = vrot.lane.b32.xlu0 %v405, 16
  %v407 = vpop.permute.xlu0 %406
  %v408 = vadd.f32 %v405, %v407
  %409 = vrot.lane.b32.xlu0 %v408, 32
  %v410 = vpop.permute.xlu0 %409
  %v411 = vadd.f32 %v408, %v410
  %412 = vrot.lane.b32.xlu0 %v411, 64
  %v413 = vpop.permute.xlu0 %412
  %v414 = vadd.f32 %v411, %v413
  %v415 = vmul.f32 %v390, %v390
  %v416 = vmul.f32 %v391, %v391
  %v417 = vmul.f32 %v392, %v392
  %v418 = vmul.f32 %v393, %v393
  %v419 = vadd.f32 %v415, %v416
  %v420 = vadd.f32 %v419, %v417
  %v421 = vadd.f32 %v420, %v418
  %v422 = vrot.slane %v421, 4
  %v423 = vadd.f32 %v421, %v422
  %v424 = vrot.slane %v423, 2
  %v425 = vadd.f32 %v423, %v424
  %v426 = vrot.slane %v425, 1
  %v427 = vadd.f32 %v425, %v426
  %428 = vrot.lane.b32.xlu0 %v427, 8
  %v429 = vpop.permute.xlu0 %428
  %v430 = vadd.f32 %v427, %v429
  %431 = vrot.lane.b32.xlu0 %v430, 16
  %v432 = vpop.permute.xlu0 %431
  %v433 = vadd.f32 %v430, %v432
  %434 = vrot.lane.b32.xlu0 %v433, 32
  %v435 = vpop.permute.xlu0 %434
  %v436 = vadd.f32 %v433, %v435
  %437 = vrot.lane.b32.xlu0 %v436, 64
  %v438 = vpop.permute.xlu0 %437
  %v439 = vadd.f32 %v436, %v438
  %v440 = vmul.f32 %v414, 0.001953125
  %v441 = vmul.f32 %v439, 0.001953125
  %v442 = vmul.f32 %v440, %v440
  %v443 = vsub.f32 %v441, %v442
  %v444 = vmax.f32 %v443, 0.0
  %v445 = vadd.f32 %v444, 1e-05
  %v446 = vrsqrt.pop %v445
  %v447 = vmul.f32 %v31, %v446
  %v448 = vmul.f32 %v447, %v440
  %v449 = vsub.f32 %v32, %v448
  %v451 = vlaneseq
  %v452 = vshrl.u32 %v451, 7
  %v453 = vsub.s32 0, %v452
  %v454 = vrot.slane %v447, %v453
  %v456 = vmul.f32 %v390, %v454
  %v457 = vmul.f32 %v391, %v454
  %v458 = vmul.f32 %v392, %v454
  %v459 = vmul.f32 %v393, %v454
  %v461 = vlaneseq
  %v462 = vshrl.u32 %v461, 7
  %v463 = vsub.s32 0, %v462
  %v464 = vrot.slane %v449, %v463
  %v466 = vadd.f32 %v456, %v464
  %v467 = vadd.f32 %v457, %v464
  %v468 = vadd.f32 %v458, %v464
  %v469 = vadd.f32 %v459, %v464
  %v470 = vmax.f32 %v466, 0.0
  %v471 = vmax.f32 %v467, 0.0
  %v472 = vmax.f32 %v468, 0.0
  %v473 = vmax.f32 %v469, 0.0
  %v474 = vld [vmem:[%s5] sm:$0x1]
  %v475 = vld [vmem:[%s6] sm:$0x1]
  %v476 = vrot.slane %v470, 7
  %v477 = vrot.slane %v471, 7
  %v478 = vrot.slane %v472, 7
  %v479 = vrot.slane %v473, 7
  %v480 = vsel %vm98, %v478, %v479
  %v481 = vsel %vm98, %v477, %v478
  %v482 = vsel %vm98, %v476, %v477
  %v483 = vsel %vm98, %v479, %v476
  %v484 = vsel %vm86, %v483, 0.0
  %v485 = vsel %vm87, %v482, 0.0
  %v486 = vsel %vm88, %v481, 0.0
  %v487 = vsel %vm89, %v480, 0.0
  %v488 = vpack.c.bf16 %v485, %v484
  %v489 = vpack.c.bf16 %v487, %v486
  %v490 = vld [vmem:[%s4] sm:$0xf]
  %v491 = vld [vmem:[%s4 + $0x4] sm:$0xf]
  %v492 = vld [vmem:[%s4 + $0x8] sm:$0xf]
  %v493 = vld [vmem:[%s4 + $0xc] sm:$0xf]
  %v494 = vld [vmem:[%s4 + $0x10] sm:$0xf]
  %v495 = vld [vmem:[%s4 + $0x14] sm:$0xf]
  %v496 = vld [vmem:[%s4 + $0x18] sm:$0xf]
  %v497 = vld [vmem:[%s4 + $0x1c] sm:$0xf]
  %v498 = vld [vmem:[%s4 + $0x20] sm:$0xf]
  %v499 = vld [vmem:[%s4 + $0x24] sm:$0xf]
  %v500 = vld [vmem:[%s4 + $0x28] sm:$0xf]
  %v501 = vld [vmem:[%s4 + $0x2c] sm:$0xf]
  %v502 = vld [vmem:[%s4 + $0x30] sm:$0xf]
  %v503 = vld [vmem:[%s4 + $0x34] sm:$0xf]
  %v504 = vld [vmem:[%s4 + $0x38] sm:$0xf]
  %v505 = vld [vmem:[%s4 + $0x3c] sm:$0xf]
  %v506 = vpack.c.bf16 %v471, %v470
  %v507 = vpack.c.bf16 %v473, %v472
  %s508 = scalar_lea.vmem %s4, 64
  %v509 = vld [vmem:[%s508] sm:$0xf]
  %v510 = vld [vmem:[%s508 + $0x4] sm:$0xf]
  %v511 = vld [vmem:[%s508 + $0x8] sm:$0xf]
  %v512 = vld [vmem:[%s508 + $0xc] sm:$0xf]
  %v513 = vld [vmem:[%s508 + $0x10] sm:$0xf]
  %v514 = vld [vmem:[%s508 + $0x14] sm:$0xf]
  %v515 = vld [vmem:[%s508 + $0x18] sm:$0xf]
  %v516 = vld [vmem:[%s508 + $0x1c] sm:$0xf]
  %v517 = vld [vmem:[%s508 + $0x20] sm:$0xf]
  %v518 = vld [vmem:[%s508 + $0x24] sm:$0xf]
  %v519 = vld [vmem:[%s508 + $0x28] sm:$0xf]
  %v520 = vld [vmem:[%s508 + $0x2c] sm:$0xf]
  %v521 = vld [vmem:[%s508 + $0x30] sm:$0xf]
  %v522 = vld [vmem:[%s508 + $0x34] sm:$0xf]
  %v523 = vld [vmem:[%s508 + $0x38] sm:$0xf]
  %v524 = vld [vmem:[%s508 + $0x3c] sm:$0xf]
  %v541 = vunpack.c.l.b16 %v509
  %v542 = vunpack.c.l.b16 %v510
  %v543 = vunpack.c.l.b16 %v511
  %v544 = vunpack.c.l.b16 %v512
  %v545 = vunpack.c.l.b16 %v513
  %v546 = vunpack.c.l.b16 %v514
  %v547 = vunpack.c.l.b16 %v515
  %v548 = vunpack.c.l.b16 %v516
  %v549 = vunpack.c.l.b16 %v517
  %v550 = vunpack.c.l.b16 %v518
  %v551 = vunpack.c.l.b16 %v519
  %v552 = vunpack.c.l.b16 %v520
  %v553 = vunpack.c.l.b16 %v521
  %v554 = vunpack.c.l.b16 %v522
  %v555 = vunpack.c.l.b16 %v523
  %v556 = vunpack.c.l.b16 %v524
  %v557 = vpack.c.b16 %v542, %v541
  %v558 = vpack.c.b16 %v544, %v543
  %v559 = vpack.c.b16 %v546, %v545
  %v560 = vpack.c.b16 %v548, %v547
  %v561 = vpack.c.b16 %v550, %v549
  %v562 = vpack.c.b16 %v552, %v551
  %v563 = vpack.c.b16 %v554, %v553
  %v564 = vpack.c.b16 %v556, %v555
  %573 = vmatprep.subr.bf16.mxu0 0
  %574 = vmatpush1.bf16.msra.mxu0 %v557
  %575 = vmatprep.subr.bf16.mxu0 0
  %576 = vmatpush1.bf16.msra.mxu0 %v558
  %577 = vmatprep.subr.bf16.mxu0 0
  %578 = vmatpush1.bf16.msra.mxu0 %v559
  %579 = vmatprep.subr.bf16.mxu0 0
  %580 = vmatpush1.bf16.msra.mxu0 %v560
  %581 = vmatprep.subr.bf16.mxu0 0
  %582 = vmatpush1.bf16.msra.mxu0 %v561
  %583 = vmatprep.subr.bf16.mxu0 0
  %584 = vmatpush1.bf16.msra.mxu0 %v562
  %585 = vmatprep.subr.bf16.mxu0 0
  %586 = vmatpush1.bf16.msra.mxu0 %v563
  %587 = vmatprep.subr.bf16.mxu0 0
  %588 = vmatpush1.bf16.msra.mxu0 %v564
  %589 = vmatprep.subr.bf16.mxu0 0
  %590 = vmatpush1.bf16.msra.mxu0 0
  %591 = vmatprep.subr.bf16.mxu0 0
  %592 = vmatpush1.bf16.msra.mxu0 0
  %593 = vmatprep.subr.bf16.mxu0 0
  %594 = vmatpush1.bf16.msra.mxu0 0
  %595 = vmatprep.subr.bf16.mxu0 0
  %596 = vmatpush1.bf16.msra.mxu0 0
  %597 = vmatprep.subr.bf16.mxu0 0
  %598 = vmatpush1.bf16.msra.mxu0 0
  %599 = vmatprep.subr.bf16.mxu0 0
  %600 = vmatpush1.bf16.msra.mxu0 0
  %601 = vmatprep.subr.bf16.mxu0 0
  %602 = vmatpush1.bf16.msra.mxu0 0
  %603 = vmatprep.subr.bf16.mxu0 0
  %604 = vmatpush1.bf16.msra.mxu0 0
  %605 = vmatprep.mubr.bf16.mxu0 0
  %606 = vmatmul.mubr.bf16.gmra.mrb[0].mxu0 %v506
  %v607 = vpop.f32.mrb[0].mxu0
  %v608 = vadd.f32 0.0, %v607
  %v609 = vpop.f32.mrb[0].mxu0
  %v610 = vpop.f32.mrb[0].mxu0
  %v611 = vadd.f32 0.0, %v610
  %v612 = vpop.f32.mrb[0].mxu0
  %613 = vmatprep.mubr.bf16.mxu0 0
  %614 = vmatmul.mubr.bf16.gmra.mrb[0].mxu0 %v507
  %v615 = vpop.f32.mrb[0].mxu0
  %v616 = vadd.f32 0.0, %v615
  %v617 = vpop.f32.mrb[0].mxu0
  %v618 = vpop.f32.mrb[0].mxu0
  %v619 = vadd.f32 0.0, %v618
  %v620 = vpop.f32.mrb[0].mxu0
  %621 = vdwg.mxu0
  %v638 = vunpack.c.l.b16 %v490
  %v639 = vunpack.c.l.b16 %v491
  %v640 = vunpack.c.l.b16 %v492
  %v641 = vunpack.c.l.b16 %v493
  %v642 = vunpack.c.l.b16 %v494
  %v643 = vunpack.c.l.b16 %v495
  %v644 = vunpack.c.l.b16 %v496
  %v645 = vunpack.c.l.b16 %v497
  %v646 = vunpack.c.l.b16 %v498
  %v647 = vunpack.c.l.b16 %v499
  %v648 = vunpack.c.l.b16 %v500
  %v649 = vunpack.c.l.b16 %v501
  %v650 = vunpack.c.l.b16 %v502
  %v651 = vunpack.c.l.b16 %v503
  %v652 = vunpack.c.l.b16 %v504
  %v653 = vunpack.c.l.b16 %v505
  %v654 = vpack.c.b16 %v639, %v638
  %v655 = vpack.c.b16 %v641, %v640
  %v656 = vpack.c.b16 %v643, %v642
  %v657 = vpack.c.b16 %v645, %v644
  %v658 = vpack.c.b16 %v647, %v646
  %v659 = vpack.c.b16 %v649, %v648
  %v660 = vpack.c.b16 %v651, %v650
  %v661 = vpack.c.b16 %v653, %v652
  %670 = vmatprep.subr.bf16.mxu0 0
  %671 = vmatpush1.bf16.msra.mxu0 %v654
  %672 = vmatprep.subr.bf16.mxu0 0
  %673 = vmatpush1.bf16.msra.mxu0 %v655
  %674 = vmatprep.subr.bf16.mxu0 0
  %675 = vmatpush1.bf16.msra.mxu0 %v656
  %676 = vmatprep.subr.bf16.mxu0 0
  %677 = vmatpush1.bf16.msra.mxu0 %v657
  %678 = vmatprep.subr.bf16.mxu0 0
  %679 = vmatpush1.bf16.msra.mxu0 %v658
  %680 = vmatprep.subr.bf16.mxu0 0
  %681 = vmatpush1.bf16.msra.mxu0 %v659
  %682 = vmatprep.subr.bf16.mxu0 0
  %683 = vmatpush1.bf16.msra.mxu0 %v660
  %684 = vmatprep.subr.bf16.mxu0 0
  %685 = vmatpush1.bf16.msra.mxu0 %v661
  %686 = vmatprep.subr.bf16.mxu0 0
  %687 = vmatpush1.bf16.msra.mxu0 0
  %688 = vmatprep.subr.bf16.mxu0 0
  %689 = vmatpush1.bf16.msra.mxu0 0
  %690 = vmatprep.subr.bf16.mxu0 0
  %691 = vmatpush1.bf16.msra.mxu0 0
  %692 = vmatprep.subr.bf16.mxu0 0
  %693 = vmatpush1.bf16.msra.mxu0 0
  %694 = vmatprep.subr.bf16.mxu0 0
  %695 = vmatpush1.bf16.msra.mxu0 0
  %696 = vmatprep.subr.bf16.mxu0 0
  %697 = vmatpush1.bf16.msra.mxu0 0
  %698 = vmatprep.subr.bf16.mxu0 0
  %699 = vmatpush1.bf16.msra.mxu0 0
  %700 = vmatprep.subr.bf16.mxu0 0
  %701 = vmatpush1.bf16.msra.mxu0 0
  %702 = vmatprep.mubr.bf16.mxu0 0
  %703 = vmatmul.mubr.bf16.gmra.mrb[0].mxu0 %v488
  %v704 = vpop.f32.mrb[0].mxu0
  %v705 = vadd.f32 %v608, %v704
  %v706 = vpop.f32.mrb[0].mxu0
  %v707 = vpop.f32.mrb[0].mxu0
  %v708 = vadd.f32 %v611, %v707
  %v709 = vpop.f32.mrb[0].mxu0
  %710 = vmatprep.mubr.bf16.mxu0 0
  %711 = vmatmul.mubr.bf16.gmra.mrb[0].mxu0 %v489
  %v712 = vpop.f32.mrb[0].mxu0
  %v713 = vadd.f32 %v616, %v712
  %v714 = vpop.f32.mrb[0].mxu0
  %v715 = vpop.f32.mrb[0].mxu0
  %v716 = vadd.f32 %v619, %v715
  %v717 = vpop.f32.mrb[0].mxu0
  %718 = vdwg.mxu0
  %v719 = vrot.slane %v470, 1
  %v720 = vrot.slane %v471, 1
  %v721 = vrot.slane %v472, 1
  %v722 = vrot.slane %v473, 1
  %v723 = vsel %vm291, %v721, %v722
  %v724 = vsel %vm291, %v720, %v721
  %v725 = vsel %vm291, %v719, %v720
  %v726 = vsel %vm291, %v722, %v719
  %v727 = vsel %vm90, %v725, 0.0
  %v728 = vsel %vm91, %v724, 0.0
  %v729 = vsel %vm92, %v723, 0.0
  %v730 = vsel %vm93, %v726, 0.0
  %v731 = vpack.c.bf16 %v728, %v727
  %v732 = vpack.c.bf16 %v730, %v729
  %s733 = scalar_lea.vmem %s4, 128
  %v734 = vld [vmem:[%s733] sm:$0xf]
  %v735 = vld [vmem:[%s733 + $0x4] sm:$0xf]
  %v736 = vld [vmem:[%s733 + $0x8] sm:$0xf]
  %v737 = vld [vmem:[%s733 + $0xc] sm:$0xf]
  %v738 = vld [vmem:[%s733 + $0x10] sm:$0xf]
  %v739 = vld [vmem:[%s733 + $0x14] sm:$0xf]
  %v740 = vld [vmem:[%s733 + $0x18] sm:$0xf]
  %v741 = vld [vmem:[%s733 + $0x1c] sm:$0xf]
  %v742 = vld [vmem:[%s733 + $0x20] sm:$0xf]
  %v743 = vld [vmem:[%s733 + $0x24] sm:$0xf]
  %v744 = vld [vmem:[%s733 + $0x28] sm:$0xf]
  %v745 = vld [vmem:[%s733 + $0x2c] sm:$0xf]
  %v746 = vld [vmem:[%s733 + $0x30] sm:$0xf]
  %v747 = vld [vmem:[%s733 + $0x34] sm:$0xf]
  %v748 = vld [vmem:[%s733 + $0x38] sm:$0xf]
  %v749 = vld [vmem:[%s733 + $0x3c] sm:$0xf]
  %v766 = vunpack.c.l.b16 %v734
  %v767 = vunpack.c.l.b16 %v735
  %v768 = vunpack.c.l.b16 %v736
  %v769 = vunpack.c.l.b16 %v737
  %v770 = vunpack.c.l.b16 %v738
  %v771 = vunpack.c.l.b16 %v739
  %v772 = vunpack.c.l.b16 %v740
  %v773 = vunpack.c.l.b16 %v741
  %v774 = vunpack.c.l.b16 %v742
  %v775 = vunpack.c.l.b16 %v743
  %v776 = vunpack.c.l.b16 %v744
  %v777 = vunpack.c.l.b16 %v745
  %v778 = vunpack.c.l.b16 %v746
  %v779 = vunpack.c.l.b16 %v747
  %v780 = vunpack.c.l.b16 %v748
  %v781 = vunpack.c.l.b16 %v749
  %v782 = vpack.c.b16 %v767, %v766
  %v783 = vpack.c.b16 %v769, %v768
  %v784 = vpack.c.b16 %v771, %v770
  %v785 = vpack.c.b16 %v773, %v772
  %v786 = vpack.c.b16 %v775, %v774
  %v787 = vpack.c.b16 %v777, %v776
  %v788 = vpack.c.b16 %v779, %v778
  %v789 = vpack.c.b16 %v781, %v780
  %798 = vmatprep.subr.bf16.mxu0 0
  %799 = vmatpush1.bf16.msra.mxu0 %v782
  %800 = vmatprep.subr.bf16.mxu0 0
  %801 = vmatpush1.bf16.msra.mxu0 %v783
  %802 = vmatprep.subr.bf16.mxu0 0
  %803 = vmatpush1.bf16.msra.mxu0 %v784
  %804 = vmatprep.subr.bf16.mxu0 0
  %805 = vmatpush1.bf16.msra.mxu0 %v785
  %806 = vmatprep.subr.bf16.mxu0 0
  %807 = vmatpush1.bf16.msra.mxu0 %v786
  %808 = vmatprep.subr.bf16.mxu0 0
  %809 = vmatpush1.bf16.msra.mxu0 %v787
  %810 = vmatprep.subr.bf16.mxu0 0
  %811 = vmatpush1.bf16.msra.mxu0 %v788
  %812 = vmatprep.subr.bf16.mxu0 0
  %813 = vmatpush1.bf16.msra.mxu0 %v789
  %814 = vmatprep.subr.bf16.mxu0 0
  %815 = vmatpush1.bf16.msra.mxu0 0
  %816 = vmatprep.subr.bf16.mxu0 0
  %817 = vmatpush1.bf16.msra.mxu0 0
  %818 = vmatprep.subr.bf16.mxu0 0
  %819 = vmatpush1.bf16.msra.mxu0 0
  %820 = vmatprep.subr.bf16.mxu0 0
  %821 = vmatpush1.bf16.msra.mxu0 0
  %822 = vmatprep.subr.bf16.mxu0 0
  %823 = vmatpush1.bf16.msra.mxu0 0
  %824 = vmatprep.subr.bf16.mxu0 0
  %825 = vmatpush1.bf16.msra.mxu0 0
  %826 = vmatprep.subr.bf16.mxu0 0
  %827 = vmatpush1.bf16.msra.mxu0 0
  %828 = vmatprep.subr.bf16.mxu0 0
  %829 = vmatpush1.bf16.msra.mxu0 0
  %830 = vmatprep.mubr.bf16.mxu0 0
  %831 = vmatmul.mubr.bf16.gmra.mrb[0].mxu0 %v731
  %v832 = vpop.f32.mrb[0].mxu0
  %v833 = vadd.f32 0.0, %v832
  %v834 = vpop.f32.mrb[0].mxu0
  %v835 = vpop.f32.mrb[0].mxu0
  %v836 = vadd.f32 0.0, %v835
  %v837 = vpop.f32.mrb[0].mxu0
  %838 = vmatprep.mubr.bf16.mxu0 0
  %839 = vmatmul.mubr.bf16.gmra.mrb[0].mxu0 %v732
  %v840 = vpop.f32.mrb[0].mxu0
  %v841 = vadd.f32 0.0, %v840
  %v842 = vpop.f32.mrb[0].mxu0
  %v843 = vpop.f32.mrb[0].mxu0
  %v844 = vadd.f32 0.0, %v843
  %v845 = vpop.f32.mrb[0].mxu0
  %846 = vdwg.mxu0
  %v847 = vadd.f32 %v705, %v833
  %v848 = vadd.f32 %v708, %v836
  %v849 = vadd.f32 %v713, %v841
  %v850 = vadd.f32 %v716, %v844
  %v851 = vadd.f32 %v847, %v848
  %v852 = vadd.f32 %v851, %v849
  %v853 = vadd.f32 %v852, %v850
  %v854 = vrot.slane %v853, 4
  %v855 = vadd.f32 %v853, %v854
  %v856 = vrot.slane %v855, 2
  %v857 = vadd.f32 %v855, %v856
  %v858 = vrot.slane %v857, 1
  %v859 = vadd.f32 %v857, %v858
  %860 = vrot.lane.b32.xlu0 %v859, 8
  %v861 = vpop.permute.xlu0 %860
  %v862 = vadd.f32 %v859, %v861
  %863 = vrot.lane.b32.xlu0 %v862, 16
  %v864 = vpop.permute.xlu0 %863
  %v865 = vadd.f32 %v862, %v864
  %866 = vrot.lane.b32.xlu0 %v865, 32
  %v867 = vpop.permute.xlu0 %866
  %v868 = vadd.f32 %v865, %v867
  %869 = vrot.lane.b32.xlu0 %v868, 64
  %v870 = vpop.permute.xlu0 %869
  %v871 = vadd.f32 %v868, %v870
  %v872 = vmul.f32 %v847, %v847
  %v873 = vmul.f32 %v848, %v848
  %v874 = vmul.f32 %v849, %v849
  %v875 = vmul.f32 %v850, %v850
  %v876 = vadd.f32 %v872, %v873
  %v877 = vadd.f32 %v876, %v874
  %v878 = vadd.f32 %v877, %v875
  %v879 = vrot.slane %v878, 4
  %v880 = vadd.f32 %v878, %v879
  %v881 = vrot.slane %v880, 2
  %v882 = vadd.f32 %v880, %v881
  %v883 = vrot.slane %v882, 1
  %v884 = vadd.f32 %v882, %v883
  %885 = vrot.lane.b32.xlu0 %v884, 8
  %v886 = vpop.permute.xlu0 %885
  %v887 = vadd.f32 %v884, %v886
  %888 = vrot.lane.b32.xlu0 %v887, 16
  %v889 = vpop.permute.xlu0 %888
  %v890 = vadd.f32 %v887, %v889
  %891 = vrot.lane.b32.xlu0 %v890, 32
  %v892 = vpop.permute.xlu0 %891
  %v893 = vadd.f32 %v890, %v892
  %894 = vrot.lane.b32.xlu0 %v893, 64
  %v895 = vpop.permute.xlu0 %894
  %v896 = vadd.f32 %v893, %v895
  %v897 = vmul.f32 %v871, 0.001953125
  %v898 = vmul.f32 %v896, 0.001953125
  %v899 = vmul.f32 %v897, %v897
  %v900 = vsub.f32 %v898, %v899
  %v901 = vmax.f32 %v900, 0.0
  %v902 = vadd.f32 %v901, 1e-05
  %v903 = vrsqrt.pop %v902
  %v904 = vmul.f32 %v474, %v903
  %v905 = vmul.f32 %v904, %v897
  %v906 = vsub.f32 %v475, %v905
  %v908 = vlaneseq
  %v909 = vshrl.u32 %v908, 7
  %v910 = vsub.s32 0, %v909
  %v911 = vrot.slane %v904, %v910
  %v913 = vmul.f32 %v847, %v911
  %v914 = vmul.f32 %v848, %v911
  %v915 = vmul.f32 %v849, %v911
  %v916 = vmul.f32 %v850, %v911
  %v918 = vlaneseq
  %v919 = vshrl.u32 %v918, 7
  %v920 = vsub.s32 0, %v919
  %v921 = vrot.slane %v906, %v920
  %v923 = vadd.f32 %v913, %v921
  %v924 = vadd.f32 %v914, %v921
  %v925 = vadd.f32 %v915, %v921
  %v926 = vadd.f32 %v916, %v921
  %v927 = vmax.f32 %v923, 0.0
  %v928 = vmax.f32 %v924, 0.0
  %v929 = vmax.f32 %v925, 0.0
  %v930 = vmax.f32 %v926, 0.0
  %931 = vst [vmem:[%s7] sm:$0xff] %v927
  %932 = vst [vmem:[%s7 + $0x8] sm:$0xff] %v928
  %933 = vst [vmem:[%s7 + $0x10] sm:$0xff] %v929
  %934 = vst [vmem:[%s7 + $0x18] sm:$0xff] %v930
  // Predicated region
  $region30: #{conv_block_forward.1} parent=0 // pred_check
    _
  $region31: #{conv_block_forward.1} parent=0 // pred_check_branch
    %936 = sbr.rel (0) target = $region33
  $region32: #{conv_block_forward.1} parent=0 // pred_region
    _
  $region33: #{conv_block_forward.1} parent=0 // pred_fallthru
    _
  // Predicated region
  $region34: #{conv_block_forward.1} parent=0 // pred_check
    _
  $region35: #{conv_block_forward.1} parent=0 // pred_check_branch
    %938 = sbr.rel (0) target = $region37
  $region36: #{conv_block_forward.1} parent=0 // pred_region
    _
  $region37: #{conv_block_forward.1} parent=0 // pred_fallthru
    _

</llo_original>
